<compile_context>
chip_gen: v5e
topology: v5e:2x2
jax: 0.10.0
libtpu: 0.0.40
codegen_flags: <defaults>
</compile_context>

<pallas_src>
import functools
import math
from typing import NamedTuple, Optional

import jax
import jax.numpy as jnp
from jax import lax
from jax.experimental import pallas as pl
from jax.experimental.pallas import tpu as pltpu


def _round_up(x, m):
    return ((x + m - 1) // m) * m


# ----------------------------------------------------------------------------
# Params (padding / casting hoisted out of the per-call path)
# ----------------------------------------------------------------------------
class MLPParams(NamedTuple):
    w1: jax.Array     # (h_pad, inner_pad)
    b1: jax.Array     # (1, inner_pad)
    w2: jax.Array     # (inner_pad, h_pad)
    b2: jax.Array     # (1, h_pad)
    hidden: int
    inner: int
    tk_i: int         # inner-dim block size upper bound (multiple of 128, divides inner_pad)


def prepare_mlp_params(w1, b1, w2, b2, *, tk_inner=512, weight_dtype=None):
    """Pad (and optionally cast) the MLP weights ONCE.

    w1: (hidden, inner), b1: (inner,), w2: (inner, hidden), b2: (hidden,).
    Zero padding is exact: padded x cols hit zero W1 rows, padded inner cols
    give GELU(0)=0 against zero W2 rows, padded hidden output cols are sliced
    away by the wrapper.
    """
    hidden, inner = w1.shape
    assert w2.shape == (inner, hidden) and b1.shape == (inner,) and b2.shape == (hidden,)

    h_pad = _round_up(hidden, 128)
    tk_i = min(_round_up(int(tk_inner), 128), _round_up(inner, 128))
    inner_pad = _round_up(inner, tk_i)

    w1_p = jnp.pad(w1, ((0, h_pad - hidden), (0, inner_pad - inner)))
    b1_p = jnp.pad(b1, (0, inner_pad - inner)).reshape(1, inner_pad)
    w2_p = jnp.pad(w2, ((0, inner_pad - inner), (0, h_pad - hidden)))
    b2_p = jnp.pad(b2, (0, h_pad - hidden)).reshape(1, h_pad)

    if weight_dtype is not None:
        # Halves weight HBM traffic for f32 checkpoints (numerics change).
        w1_p = w1_p.astype(weight_dtype)
        w2_p = w2_p.astype(weight_dtype)

    return MLPParams(w1_p, b1_p, w2_p, b2_p, hidden, inner, tk_i)


# ----------------------------------------------------------------------------
# Per-generation tile selection
# ----------------------------------------------------------------------------
def _chip_generation():
    try:
        kind = jax.devices()[0].device_kind.lower().replace(" ", "")
    except Exception:
        return "unknown"
    if "v5lite" in kind or "v5e" in kind:
        return "v5e"
    if "v6" in kind:
        return "v6e"
    if "7x" in kind or "v7" in kind:
        return "v7x"
    return "unknown"


def _choose_tiles(n_tok, h_pad, inner_pad, tk_max, in_isz, w_isz, out_isz, acc_isz):
    gen = _chip_generation()
    if gen == "v6e":
        # ridge ~655 flops/byte (bf16) -> tm ~ 768; 128 MiB VMEM has room.
        target_tm, budget, vmem_limit = 768, 100 << 20, 110 << 20
    elif gen == "v5e":
        # ridge ~240 flops/byte -> tm ~ 384 clears it with margin.
        target_tm, budget, vmem_limit = 384, 100 << 20, 110 << 20
    else:
        # v7x (64 MiB VMEM, ridge ~311 flops/byte) or unknown: be conservative.
        target_tm, budget, vmem_limit = 384, 52 << 20, 56 << 20

    try:  # refine against actual VMEM capacity when available
        cap = int(pltpu.get_tpu_info().vmem_capacity_bytes)
        budget = min(budget, int(cap * 0.80))
        vmem_limit = min(vmem_limit, int(cap * 0.88))
    except Exception:
        pass

    tk_i = min(tk_max, inner_pad)
    tm = min(target_tm, _round_up(n_tok, 8))

    # v7x megacore: make sure grid[0] >= 2 so both TensorCores get a token tile.
    if gen == "v7x" and n_tok > 8:
        tm = min(tm, _round_up(pl.cdiv(n_tok, 2), 8))

    def footprint(tm_, tk_):
        wts = 2 * 2 * h_pad * tk_ * w_isz           # W1 + W2 blocks, double-buffered
        bias = 2 * 8 * (tk_ + h_pad) * w_isz        # (1, .) blocks pad sublane to 8
        x_out = 2 * tm_ * h_pad * (in_isz + out_isz)
        acc = tm_ * h_pad * acc_isz
        return wts + bias + x_out + acc

    # Shrink tm first (keeps tk_i large so the acc RMW hides under MXU time);
    # tk_i is only reduced as a last resort and must keep dividing inner_pad.
    while footprint(tm, tk_i) > budget and tm > 8:
        tm = max(8, _round_up(tm // 2, 8))
    while footprint(tm, tk_i) > budget and tk_i > 128:
        t = tk_i - 128
        while t > 128 and inner_pad % t != 0:
            t -= 128
        tk_i = max(128, t)

    return tm, tk_i, vmem_limit


# ----------------------------------------------------------------------------
# Kernels
# ----------------------------------------------------------------------------
def _mlp_block(x_ref, w1_ref, b1_ref, w2_ref, mxu_dtype):
    """One inner-dim block: GELU(x @ W1_blk + b1_blk) @ W2_blk, f32 result."""
    xa = x_ref[...]
    w1 = w1_ref[...]
    if mxu_dtype is not None:
        xa = xa.astype(mxu_dtype)
        w1 = w1.astype(mxu_dtype)
    h = jnp.dot(xa, w1, preferred_element_type=jnp.float32)
    h = h + b1_ref[...].astype(jnp.float32)
    # Exact (erf) GELU in f32 -- matches torch.nn.GELU() default numerics.
    h = 0.5 * h * (1.0 + lax.erf(h * (1.0 / math.sqrt(2.0))))
    h = h.astype(mxu_dtype if mxu_dtype is not None else w2_ref.dtype)
    return jnp.dot(h, w2_ref[...], preferred_element_type=jnp.float32)


def _mlp_kernel_accout(mxu_dtype, x_ref, w1_ref, b1_ref, w2_ref, b2_ref, o_ref):
    # f32 output: accumulate directly into the resident output block.
    k = pl.program_id(1)

    @pl.when(k == 0)
    def _():
        o_ref[...] = jnp.broadcast_to(b2_ref[...].astype(o_ref.dtype), o_ref.shape)

    o_ref[...] += _mlp_block(x_ref, w1_ref, b1_ref, w2_ref, mxu_dtype)


def _mlp_kernel_scratch(mxu_dtype, x_ref, w1_ref, b1_ref, w2_ref, b2_ref, o_ref,
                        acc_ref):
    # Sub-f32 output: f32 VMEM accumulator, cast once at the last k-step.
    k = pl.program_id(1)

    @pl.when(k == 0)
    def _():
        acc_ref[...] = jnp.broadcast_to(b2_ref[...].astype(jnp.float32), acc_ref.shape)

    acc_ref[...] += _mlp_block(x_ref, w1_ref, b1_ref, w2_ref, mxu_dtype)

    @pl.when(k == pl.num_programs(1) - 1)
    def _():
        o_ref[...] = acc_ref[...].astype(o_ref.dtype)


# ----------------------------------------------------------------------------
# Wrapper
# ----------------------------------------------------------------------------
def mlp_pallas(x, params: MLPParams, *, mxu_dtype: Optional[jnp.dtype] = None):
    """x: (..., hidden) -> (..., hidden).  `params` from prepare_mlp_params."""
    orig_shape = x.shape
    hidden, inner = params.hidden, params.inner
    assert orig_shape[-1] == hidden
    h_pad, inner_pad = params.w1.shape[0], params.w1.shape[1]

    x2d = x.reshape(-1, hidden)
    n_tok = x2d.shape[0]
    out_dtype = x.dtype

    acc_into_out = jnp.dtype(out_dtype) == jnp.dtype(jnp.float32)
    in_isz = jnp.dtype(x.dtype).itemsize
    w_isz = jnp.dtype(params.w1.dtype).itemsize
    out_isz = jnp.dtype(out_dtype).itemsize
    acc_isz = 0 if acc_into_out else 4

    tm, tk_i, vmem_limit = _choose_tiles(
        n_tok, h_pad, inner_pad, params.tk_i, in_isz, w_isz, out_isz, acc_isz)
    n_tok_pad = _round_up(n_tok, tm)

    # Pad x only when actually needed (no wrapper HBM round-trip when aligned).
    if n_tok_pad != n_tok or h_pad != hidden:
        x_p = jnp.pad(x2d, ((0, n_tok_pad - n_tok), (0, h_pad - hidden)))
    else:
        x_p = x2d

    grid = (n_tok_pad // tm, inner_pad // tk_i)

    # Scheduler hint: weights are re-streamed once per token tile.
    weight_bytes = (params.w1.size * w_isz + params.w2.size * w_isz
                    + params.b1.size * jnp.dtype(params.b1.dtype).itemsize
                    + params.b2.size * jnp.dtype(params.b2.dtype).itemsize)
    cost = pl.CostEstimate(
        flops=int(4 * n_tok_pad * h_pad * inner_pad),
        transcendentals=int(n_tok_pad * inner_pad),
        bytes_accessed=int(x_p.size * in_isz
                           + n_tok_pad * h_pad * out_isz
                           + grid[0] * weight_bytes),
    )

    if acc_into_out:
        kernel = functools.partial(_mlp_kernel_accout, mxu_dtype)
        scratch_shapes = []
    else:
        kernel = functools.partial(_mlp_kernel_scratch, mxu_dtype)
        scratch_shapes = [pltpu.VMEM((tm, h_pad), jnp.float32)]

    out = pl.pallas_call(
        kernel,
        out_shape=jax.ShapeDtypeStruct((n_tok_pad, h_pad), out_dtype),
        grid_spec=pltpu.PrefetchScalarGridSpec(
            num_scalar_prefetch=0,
            grid=grid,
            in_specs=[
                pl.BlockSpec((tm, h_pad), lambda i, k: (i, 0)),        # x tile
                pl.BlockSpec((h_pad, tk_i), lambda i, k: (0, k)),      # W1 block
                pl.BlockSpec((1, tk_i), lambda i, k: (0, k)),          # b1 block
                pl.BlockSpec((tk_i, h_pad), lambda i, k: (k, 0)),      # W2 block
                pl.BlockSpec((1, h_pad), lambda i, k: (0, 0)),         # b2
            ],
            out_specs=pl.BlockSpec((tm, h_pad), lambda i, k: (i, 0)),
            scratch_shapes=scratch_shapes,
        ),
        compiler_params=pltpu.CompilerParams(
            dimension_semantics=("parallel", "arbitrary"),
            vmem_limit_bytes=int(vmem_limit)),
        cost_estimate=cost,
    )(x_p, params.w1, params.b1, params.w2, params.b2)

    if n_tok_pad != n_tok or h_pad != hidden:
        out = out[:n_tok, :hidden]
    return out.reshape(orig_shape)


# ----------------------------------------------------------------------------
# Init matching nn.Linear's U(-1/sqrt(fan_in), 1/sqrt(fan_in))
# ----------------------------------------------------------------------------
def init_mlp_params(key, hidden_dim, exp_factor=4.0, dtype=jnp.float32):
    inner = int(hidden_dim * exp_factor)
    k1, k2, k3, k4 = jax.random.split(key, 4)
    bnd1 = 1.0 / math.sqrt(hidden_dim)
    bnd2 = 1.0 / math.sqrt(inner)
    # stored as [in, out] (transpose of PyTorch's [out, in] weight layout)
    w1 = jax.random.uniform(k1, (hidden_dim, inner), dtype, -bnd1, bnd1)
    b1 = jax.random.uniform(k2, (inner,), dtype, -bnd1, bnd1)
    w2 = jax.random.uniform(k3, (inner, hidden_dim), dtype, -bnd2, bnd2)
    b2 = jax.random.uniform(k4, (hidden_dim,), dtype, -bnd2, bnd2)
    return w1, b1, w2, b2


if __name__ == "__main__":
    hidden_dim = 32
    exp_factor = 4.0
    batch, seq = 2, 8

    key = jax.random.PRNGKey(0)
    kx, kp = jax.random.split(key)
    x = jax.random.normal(kx, (batch, seq, hidden_dim), jnp.float32)
    w1, b1, w2, b2 = init_mlp_params(kp, hidden_dim, exp_factor)

    params = prepare_mlp_params(w1, b1, w2, b2)     # pad/cast once, not per call
    y = mlp_pallas(x, params)
    y = jax.block_until_ready(y)

    # Reference in plain JAX (exact-erf GELU, like torch.nn.GELU()).
    h_ref = x.reshape(-1, hidden_dim) @ w1 + b1
    h_ref = 0.5 * h_ref * (1.0 + lax.erf(h_ref / jnp.sqrt(2.0)))
    y_ref = (h_ref @ w2 + b2).reshape(batch, seq, hidden_dim)
    assert y.shape == y_ref.shape
    assert jnp.allclose(y, y_ref, atol=5e-5, rtol=5e-5), "mismatch vs reference"

    print("KERNEL_OK")
</pallas_src>

<mosaic_0001>
module attributes {stable_mosaic.version = 11 : i64} {
  func.func @_mlp_kernel_accout(%arg0: i32, %arg1: i32, %arg2: memref<16x128xf32, #tpu.memory_space<vmem>>, %arg3: memref<128x128xf32, #tpu.memory_space<vmem>>, %arg4: memref<1x128xf32, #tpu.memory_space<vmem>>, %arg5: memref<128x128xf32, #tpu.memory_space<vmem>>, %arg6: memref<1x128xf32, #tpu.memory_space<vmem>>, %arg7: memref<16x128xf32, #tpu.memory_space<vmem>>) attributes {dimension_semantics = [#tpu.dimension_semantics<parallel>, #tpu.dimension_semantics<arbitrary>], iteration_bounds = array<i64: 1, 1>, scalar_prefetch = 0 : i64, scratch_operands = 0 : i64, tpu.core_type = #tpu.core_type<tc>, window_params = [{transform_indices = @transform_0, window_bounds = array<i64: 16, 128>}, {transform_indices = @transform_1, window_bounds = array<i64: 128, 128>}, {transform_indices = @transform_2, window_bounds = array<i64: 1, 128>}, {transform_indices = @transform_3, window_bounds = array<i64: 128, 128>}, {pipeline_mode = #tpu.pipeline_mode<synchronous>, transform_indices = @transform_4, window_bounds = array<i64: 1, 128>}, {transform_indices = @transform_5, window_bounds = array<i64: 16, 128>}]} {
    %c0_i32 = arith.constant 0 : i32
    %0 = arith.cmpi eq, %arg1, %c0_i32 : i32
    %1 = arith.extui %0 : i1 to i32
    %c0_i32_0 = arith.constant 0 : i32
    %2 = arith.cmpi ne, %1, %c0_i32_0 : i32
    scf.if %2 {
      %c0_16 = arith.constant 0 : index
      %c0_17 = arith.constant 0 : index
      %22 = vector.load %arg6[%c0_16, %c0_17] : memref<1x128xf32, #tpu.memory_space<vmem>>, vector<1x128xf32>
      %23 = vector.shape_cast %22 : vector<1x128xf32> to vector<1x128xf32>
      %24 = vector.broadcast %23 : vector<1x128xf32> to vector<16x128xf32>
      %c0_18 = arith.constant 0 : index
      %c0_19 = arith.constant 0 : index
      %25 = vector.load %arg7[%c0_18, %c0_19] : memref<16x128xf32, #tpu.memory_space<vmem>>, vector<16x128xf32>
      tpu.vector_store %arg7[%c0_18, %c0_19], %24 {strides = array<i32>} : memref<16x128xf32, #tpu.memory_space<vmem>>, vector<16x128xf32>,
    } else {
    }
    %c0 = arith.constant 0 : index
    %c0_1 = arith.constant 0 : index
    %3 = vector.load %arg7[%c0, %c0_1] : memref<16x128xf32, #tpu.memory_space<vmem>>, vector<16x128xf32>
    %c0_2 = arith.constant 0 : index
    %c0_3 = arith.constant 0 : index
    %4 = vector.load %arg2[%c0_2, %c0_3] : memref<16x128xf32, #tpu.memory_space<vmem>>, vector<16x128xf32>
    %c0_4 = arith.constant 0 : index
    %c0_5 = arith.constant 0 : index
    %5 = vector.load %arg3[%c0_4, %c0_5] : memref<128x128xf32, #tpu.memory_space<vmem>>, vector<128x128xf32>
    %cst = arith.constant dense<0.000000e+00> : vector<16x128xf32>
    %6 = tpu.matmul %4, %5, %cst {dimension_numbers = #tpu.dot_dimension_numbers<[1], [0], [0], [1], [0, 0, 1, 1], [], []>} : vector<16x128xf32>, vector<128x128xf32>, vector<16x128xf32> -> vector<16x128xf32>
    %c0_6 = arith.constant 0 : index
    %c0_7 = arith.constant 0 : index
    %7 = vector.load %arg4[%c0_6, %c0_7] : memref<1x128xf32, #tpu.memory_space<vmem>>, vector<1x128xf32>
    %8 = vector.broadcast %7 : vector<1x128xf32> to vector<16x128xf32>
    %9 = arith.addf %6, %8 : vector<16x128xf32>
    %cst_8 = arith.constant 5.000000e-01 : f32
    %10 = vector.broadcast %cst_8 : f32 to vector<16x128xf32>
    %11 = arith.mulf %10, %9 : vector<16x128xf32>
    %cst_9 = arith.constant 0.707106769 : f32
    %12 = vector.broadcast %cst_9 : f32 to vector<16x128xf32>
    %13 = arith.mulf %9, %12 : vector<16x128xf32>
    %14 = math.erf %13 : vector<16x128xf32>
    %cst_10 = arith.constant 1.000000e+00 : f32
    %15 = vector.broadcast %cst_10 : f32 to vector<16x128xf32>
    %16 = arith.addf %15, %14 : vector<16x128xf32>
    %17 = arith.mulf %11, %16 : vector<16x128xf32>
    %c0_11 = arith.constant 0 : index
    %c0_12 = arith.constant 0 : index
    %18 = vector.load %arg5[%c0_11, %c0_12] : memref<128x128xf32, #tpu.memory_space<vmem>>, vector<128x128xf32>
    %cst_13 = arith.constant dense<0.000000e+00> : vector<16x128xf32>
    %19 = tpu.matmul %17, %18, %cst_13 {dimension_numbers = #tpu.dot_dimension_numbers<[1], [0], [0], [1], [0, 0, 1, 1], [], []>} : vector<16x128xf32>, vector<128x128xf32>, vector<16x128xf32> -> vector<16x128xf32>
    %20 = arith.addf %3, %19 : vector<16x128xf32>
    %c0_14 = arith.constant 0 : index
    %c0_15 = arith.constant 0 : index
    %21 = vector.load %arg7[%c0_14, %c0_15] : memref<16x128xf32, #tpu.memory_space<vmem>>, vector<16x128xf32>
    tpu.vector_store %arg7[%c0_14, %c0_15], %20 {strides = array<i32>} : memref<16x128xf32, #tpu.memory_space<vmem>>, vector<16x128xf32>,
    return
  }
  func.func @transform_0(%arg0: i32, %arg1: i32) -> (i32, i32) {
    %c0_i32 = arith.constant 0 : i32
    %c0_i32_0 = arith.constant 0 : i32
    return %arg0, %c0_i32 : i32, i32
  }
  func.func @transform_1(%arg0: i32, %arg1: i32) -> (i32, i32) {
    %c0_i32 = arith.constant 0 : i32
    %c0_i32_0 = arith.constant 0 : i32
    return %c0_i32, %arg1 : i32, i32
  }
  func.func @transform_2(%arg0: i32, %arg1: i32) -> (i32, i32) {
    %c0_i32 = arith.constant 0 : i32
    %c0_i32_0 = arith.constant 0 : i32
    return %c0_i32, %arg1 : i32, i32
  }
  func.func @transform_3(%arg0: i32, %arg1: i32) -> (i32, i32) {
    %c0_i32 = arith.constant 0 : i32
    %c0_i32_0 = arith.constant 0 : i32
    return %arg1, %c0_i32 : i32, i32
  }
  func.func @transform_4(%arg0: i32, %arg1: i32) -> (i32, i32) {
    %c0_i32 = arith.constant 0 : i32
    %c0_i32_0 = arith.constant 0 : i32
    %c0_i32_1 = arith.constant 0 : i32
    return %c0_i32, %c0_i32_0 : i32, i32
  }
  func.func @transform_5(%arg0: i32, %arg1: i32) -> (i32, i32) {
    %c0_i32 = arith.constant 0 : i32
    %c0_i32_0 = arith.constant 0 : i32
    return %arg0, %c0_i32 : i32, i32
  }
}

</mosaic_0001>

<llo_original>
// kernel: tpu_custom_call.1
$region0: #{tpu_custom_call.1}
  #allocation0 [shape = 'u32[]', space=smem, size = 0x4, offset = 0x4, fixed_abs, tag = 'smem constant byte address 0x4 - core index']
  #allocation1 [shape = 'u32[72,128]{1,0:T(1,128)}', space=vmem, size = 0x9000, scoped, tag = 'internal scratch']
  %s0 = inlined_call_operand.hbm [shape: f32[16,128], index: 0, kind: input, shape index: {}]
  %s1 = inlined_call_operand.hbm [shape: f32[128,128], index: 1, kind: input, shape index: {}]
  %s2 = inlined_call_operand.vmem [shape: f32[1,128], index: 2, kind: input, shape index: {}]
  %s3 = inlined_call_operand.hbm [shape: f32[128,128], index: 3, kind: input, shape index: {}]
  %s4 = inlined_call_operand.vmem [shape: f32[1,128], index: 4, kind: input, shape index: {}]
  %s5 = inlined_call_operand.hbm [shape: f32[16,128], index: 5, kind: output, shape index: {}]
  %s6 = sld [smem:[#allocation0]]
  $region46: #{tpu_custom_call.1} parent=0
    _
  %s8 = ssub.s32 1, %s6
  %s9 = scalar_select 0, %s8, %s6
  $region1: #{tpu_custom_call.1} parent=0
    #allocation2 [shape = 'u8[8192]{0}', space=vmem, size = 0x2000, scoped, tag = 'input window, operand 0, single buffered']
    #allocation3 [shape = 's32[1]{0}', space=sflag, size = 0x4, scoped, tag = 'scoped memory for tpu_custom_call.1']
    #allocation4 [shape = 's32[1]{0}', space=sflag, size = 0x4, scoped, tag = 'scoped memory for tpu_custom_call.1']
    #allocation5 [shape = 'u8[65536]{0}', space=vmem, size = 0x10000, scoped, tag = 'input window, operand 1, single buffered']
    #allocation6 [shape = 's32[1]{0}', space=sflag, size = 0x4, scoped, tag = 'scoped memory for tpu_custom_call.1']
    #allocation7 [shape = 'u8[65536]{0}', space=vmem, size = 0x10000, scoped, tag = 'input window, operand 3, single buffered']
    #allocation8 [shape = 'u8[8192]{0}', space=vmem, size = 0x2000, scoped, tag = 'output window, operand 0, single buffered']
    %10 = vsyncpa [#allocation3], 0
    %11 = vsyncpa [#allocation6], 0
    %12 = vsyncpa [#allocation4], 0
    // Predicated region
    $region2: #{tpu_custom_call.1} parent=1 // pred_check
      _
    $region3: #{tpu_custom_call.1} parent=1 // pred_check_branch
      %14 = sbr.rel (0) target = $region5
    $region4: #{tpu_custom_call.1} parent=1 // pred_region
      %16 = vsyncadd [#allocation3], 0
      %s17 = sshll.u32 %s0, 4
      %s18 = int_to_ptr.hbm [resolvable:$true] %s17
      %s19 = sshll.u32 [#allocation2], 4
      %s20 = int_to_ptr.vmem [resolvable:$true] %s19
      %25 = dma.hbm_to_vmem [thread:$0]  %s18, 256, %s20, [#allocation3], 128, 128, 8
    $region5: #{tpu_custom_call.1} parent=1 // pred_fallthru
      _
    // Predicated region
    $region6: #{tpu_custom_call.1} parent=1 // pred_check
      _
    $region7: #{tpu_custom_call.1} parent=1 // pred_check_branch
      %27 = sbr.rel (0) target = $region9
    $region8: #{tpu_custom_call.1} parent=1 // pred_region
      %29 = vsyncadd [#allocation6], 0
      %s30 = sshll.u32 %s1, 4
      %s31 = int_to_ptr.hbm [resolvable:$true] %s30
      %s32 = sshll.u32 [#allocation5], 4
      %s33 = int_to_ptr.vmem [resolvable:$true] %s32
      %38 = dma.hbm_to_vmem [thread:$0]  %s31, 2048, %s33, [#allocation6], 128, 128, 8
    $region9: #{tpu_custom_call.1} parent=1 // pred_fallthru
      _
    // Predicated region
    $region10: #{tpu_custom_call.1} parent=1 // pred_check
      _
    $region11: #{tpu_custom_call.1} parent=1 // pred_check_branch
      %40 = sbr.rel (0) target = $region13
    $region12: #{tpu_custom_call.1} parent=1 // pred_region
      _
    $region13: #{tpu_custom_call.1} parent=1 // pred_fallthru
      _
    // Predicated region
    $region14: #{tpu_custom_call.1} parent=1 // pred_check
      _
    $region15: #{tpu_custom_call.1} parent=1 // pred_check_branch
      %42 = sbr.rel (0) target = $region17
    $region16: #{tpu_custom_call.1} parent=1 // pred_region
      %44 = vsyncadd [#allocation6], 0
      %s45 = sshll.u32 %s3, 4
      %s46 = int_to_ptr.hbm [resolvable:$true] %s45
      %s47 = sshll.u32 [#allocation7], 4
      %s48 = int_to_ptr.vmem [resolvable:$true] %s47
      %53 = dma.hbm_to_vmem [thread:$0]  %s46, 2048, %s48, [#allocation6], 128, 128, 8
    $region17: #{tpu_custom_call.1} parent=1 // pred_fallthru
      _
    // Predicated region
    $region18: #{tpu_custom_call.1} parent=1 // pred_check
      _
    $region19: #{tpu_custom_call.1} parent=1 // pred_check_branch
      %55 = sbr.rel (0) target = $region21
    $region20: #{tpu_custom_call.1} parent=1 // pred_region
      _
    $region21: #{tpu_custom_call.1} parent=1 // pred_fallthru
      _
    // Predicated region
    $region22: #{tpu_custom_call.1} parent=1 // pred_check
      _
    $region23: #{tpu_custom_call.1} parent=1 // pred_check_branch
      %57 = sbr.rel (0) target = $region25
    $region24: #{tpu_custom_call.1} parent=1 // pred_region
      %59 = dma.done [#allocation3], 256
    $region25: #{tpu_custom_call.1} parent=1 // pred_fallthru
      _
    // Predicated region
    $region26: #{tpu_custom_call.1} parent=1 // pred_check
      _
    $region27: #{tpu_custom_call.1} parent=1 // pred_check_branch
      %61 = sbr.rel (0) target = $region29
    $region28: #{tpu_custom_call.1} parent=1 // pred_region
      %63 = dma.done [#allocation6], 2048
    $region29: #{tpu_custom_call.1} parent=1 // pred_fallthru
      _
    // Predicated region
    $region30: #{tpu_custom_call.1} parent=1 // pred_check
      _
    $region31: #{tpu_custom_call.1} parent=1 // pred_check_branch
      %65 = sbr.rel (0) target = $region33
    $region32: #{tpu_custom_call.1} parent=1 // pred_region
      %67 = dma.done [#allocation6], 2048
    $region33: #{tpu_custom_call.1} parent=1 // pred_fallthru
      _
    %p68 = scmp.eq.s32.totalorder 0, 0
    // Predicated region
    $region34: #{tpu_custom_call.1} parent=1 // pred_check
      %p69 = pneg %p68
    $region35: #{tpu_custom_call.1} parent=1 // pred_check_branch
      %71 = sbr.rel (%p69) target = $region37
    $region36: #{tpu_custom_call.1} parent=1 // pred_region
      %v72 = vld [vmem:[%s4] sm:$0x1]
      %v74 = vperm.slane %v72, 0
      %76 = vst [vmem:[#allocation8] sm:$0xff] %v74
      %77 = vst [vmem:[#allocation8 + $0x8] sm:$0xff] %v74
    $region37: #{tpu_custom_call.1} parent=1 // pred_fallthru
      _
    %v78 = vld [vmem:[#allocation8] sm:$0xff]
    %v79 = vld [vmem:[#allocation8 + $0x8] sm:$0xff]
    %v80 = vld [vmem:[#allocation2] sm:$0xff]
    %v81 = vld [vmem:[#allocation2 + $0x8] sm:$0xff]
    %v82 = vld [vmem:[#allocation5] sm:$0xff]
    %v83 = vld [vmem:[#allocation5 + $0x8] sm:$0xff]
    %v84 = vld [vmem:[#allocation5 + $0x10] sm:$0xff]
    %v85 = vld [vmem:[#allocation5 + $0x18] sm:$0xff]
    %v86 = vld [vmem:[#allocation5 + $0x20] sm:$0xff]
    %v87 = vld [vmem:[#allocation5 + $0x28] sm:$0xff]
    %v88 = vld [vmem:[#allocation5 + $0x30] sm:$0xff]
    %v89 = vld [vmem:[#allocation5 + $0x38] sm:$0xff]
    %v90 = vld [vmem:[#allocation5 + $0x40] sm:$0xff]
    %v91 = vld [vmem:[#allocation5 + $0x48] sm:$0xff]
    %v92 = vld [vmem:[#allocation5 + $0x50] sm:$0xff]
    %v93 = vld [vmem:[#allocation5 + $0x58] sm:$0xff]
    %v94 = vld [vmem:[#allocation5 + $0x60] sm:$0xff]
    %v95 = vld [vmem:[#allocation5 + $0x68] sm:$0xff]
    %v96 = vld [vmem:[#allocation5 + $0x70] sm:$0xff]
    %v97 = vld [vmem:[#allocation5 + $0x78] sm:$0xff]
    %v98 = vld [vmem:[%s2] sm:$0x1]
    %v100 = vperm.slane %v98, 0
    %102 = vmatpush.msra.mxu0 %v97
    %103 = vmatpush.msra.mxu0 %v96
    %104 = vmatpush.msra.mxu0 %v95
    %105 = vmatpush.msra.mxu0 %v94
    %106 = vmatpush.msra.mxu0 %v93
    %107 = vmatpush.msra.mxu0 %v92
    %108 = vmatpush.msra.mxu0 %v91
    %109 = vmatpush.msra.mxu0 %v90
    %110 = vmatpush.msra.mxu0 %v89
    %111 = vmatpush.msra.mxu0 %v88
    %112 = vmatpush.msra.mxu0 %v87
    %113 = vmatpush.msra.mxu0 %v86
    %114 = vmatpush.msra.mxu0 %v85
    %115 = vmatpush.msra.mxu0 %v84
    %116 = vmatpush.msra.mxu0 %v83
    %117 = vmatpush.msra.mxu0 %v82
    %118 = vmatmul.f32.gmra.mxu0 %v80
    %v119 = vpop.f32.mrf.mxu0
    %v120 = vadd.f32 %v100, %v119
    %121 = vmatmul.f32.gmra.mxu0 %v81
    %v122 = vpop.f32.mrf.mxu0
    %v123 = vadd.f32 %v100, %v122
    %124 = vdwg.mxu0
    %v125 = vmul.f32 %v120, 0.5
    %v126 = vmul.f32 %v123, 0.5
    %v127 = vmul.f32 %v120, 0.70710677
    %v128 = vmul.f32 %v123, 0.70710677
    %v129 = vmul.f32 %v127, %v127
    %v130 = vmin.f32 16.0, %v129
    %v131 = vmul.f32 %v130, 2.1237322e-06
    %v132 = vadd.f32 %v131, 0.00028619796
    %v133 = vmul.f32 %v130, %v132
    %v134 = vadd.f32 %v133, 0.0036580483
    %v135 = vmul.f32 %v130, %v134
    %v136 = vadd.f32 %v135, 0.05243302
    %v137 = vmul.f32 %v130, %v136
    %v138 = vadd.f32 %v137, 0.18741608
    %v139 = vmul.f32 %v130, %v138
    %v140 = vadd.f32 %v139, 1.1283791
    %v141 = vmul.f32 %v127, %v140
    %v142 = vmul.f32 %v130, 3.8918573e-05
    %v143 = vadd.f32 %v142, 0.001143296
    %v144 = vmul.f32 %v130, %v143
    %v145 = vadd.f32 %v144, 0.014752088
    %v146 = vmul.f32 %v130, %v145
    %v147 = vadd.f32 %v146, 0.112945676
    %v148 = vmul.f32 %v130, %v147
    %v149 = vadd.f32 %v148, 0.4994258
    %v150 = vmul.f32 %v130, %v149
    %v151 = vadd.f32 %v150, 1.0
    %v152 = vrcp.pop %v151
    %v153 = vmul.f32 %v151, %v152
    %v154 = vsub.f32 1.0, %v153
    %v155 = vmul.f32 %v152, %v154
    %v156 = vadd.f32 %v152, %v155
    %vm157 = vweird.f32 %v151
    %vm158 = vweird.f32 %v152
    %vm159 = vmor %vm157, %vm158
    %v160 = vsel %vm159, %v152, %v156
    %v161 = vand.u32 2147483647, %v151
    %vm162 = vcmp.eq.f32.partialorder %v161, 8.507059e+37
    %v163 = vand.u32 %v151, 2147483648
    %v164 = vor.u32 1.1754944e-38, %v163
    %v165 = vsel %vm162, %v164, %v160
    %v166 = vmul.f32 %v141, %v165
    %v167 = vmin.f32 %v166, 1.0
    %v168 = vmax.f32 %v167, -1.0
    %v169 = vmul.f32 %v128, %v128
    %v170 = vmin.f32 16.0, %v169
    %v171 = vmul.f32 %v170, 2.1237322e-06
    %v172 = vadd.f32 %v171, 0.00028619796
    %v173 = vmul.f32 %v170, %v172
    %v174 = vadd.f32 %v173, 0.0036580483
    %v175 = vmul.f32 %v170, %v174
    %v176 = vadd.f32 %v175, 0.05243302
    %v177 = vmul.f32 %v170, %v176
    %v178 = vadd.f32 %v177, 0.18741608
    %v179 = vmul.f32 %v170, %v178
    %v180 = vadd.f32 %v179, 1.1283791
    %v181 = vmul.f32 %v128, %v180
    %v182 = vmul.f32 %v170, 3.8918573e-05
    %v183 = vadd.f32 %v182, 0.001143296
    %v184 = vmul.f32 %v170, %v183
    %v185 = vadd.f32 %v184, 0.014752088
    %v186 = vmul.f32 %v170, %v185
    %v187 = vadd.f32 %v186, 0.112945676
    %v188 = vmul.f32 %v170, %v187
    %v189 = vadd.f32 %v188, 0.4994258
    %v190 = vmul.f32 %v170, %v189
    %v191 = vadd.f32 %v190, 1.0
    %v192 = vrcp.pop %v191
    %v193 = vmul.f32 %v191, %v192
    %v194 = vsub.f32 1.0, %v193
    %v195 = vmul.f32 %v192, %v194
    %v196 = vadd.f32 %v192, %v195
    %vm197 = vweird.f32 %v191
    %vm198 = vweird.f32 %v192
    %vm199 = vmor %vm197, %vm198
    %v200 = vsel %vm199, %v192, %v196
    %v201 = vand.u32 2147483647, %v191
    %vm202 = vcmp.eq.f32.partialorder %v201, 8.507059e+37
    %v203 = vand.u32 %v191, 2147483648
    %v204 = vor.u32 1.1754944e-38, %v203
    %v205 = vsel %vm202, %v204, %v200
    %v206 = vmul.f32 %v181, %v205
    %v207 = vmin.f32 %v206, 1.0
    %v208 = vmax.f32 %v207, -1.0
    %v209 = vadd.f32 %v168, 1.0
    %v210 = vadd.f32 %v208, 1.0
    %v211 = vmul.f32 %v125, %v209
    %v212 = vmul.f32 %v126, %v210
    %v213 = vld [vmem:[#allocation7] sm:$0xff]
    %v214 = vld [vmem:[#allocation7 + $0x8] sm:$0xff]
    %v215 = vld [vmem:[#allocation7 + $0x10] sm:$0xff]
    %v216 = vld [vmem:[#allocation7 + $0x18] sm:$0xff]
    %v217 = vld [vmem:[#allocation7 + $0x20] sm:$0xff]
    %v218 = vld [vmem:[#allocation7 + $0x28] sm:$0xff]
    %v219 = vld [vmem:[#allocation7 + $0x30] sm:$0xff]
    %v220 = vld [vmem:[#allocation7 + $0x38] sm:$0xff]
    %v221 = vld [vmem:[#allocation7 + $0x40] sm:$0xff]
    %v222 = vld [vmem:[#allocation7 + $0x48] sm:$0xff]
    %v223 = vld [vmem:[#allocation7 + $0x50] sm:$0xff]
    %v224 = vld [vmem:[#allocation7 + $0x58] sm:$0xff]
    %v225 = vld [vmem:[#allocation7 + $0x60] sm:$0xff]
    %v226 = vld [vmem:[#allocation7 + $0x68] sm:$0xff]
    %v227 = vld [vmem:[#allocation7 + $0x70] sm:$0xff]
    %v228 = vld [vmem:[#allocation7 + $0x78] sm:$0xff]
    %229 = vmatpush.msra.mxu0 %v228
    %230 = vmatpush.msra.mxu0 %v227
    %231 = vmatpush.msra.mxu0 %v226
    %232 = vmatpush.msra.mxu0 %v225
    %233 = vmatpush.msra.mxu0 %v224
    %234 = vmatpush.msra.mxu0 %v223
    %235 = vmatpush.msra.mxu0 %v222
    %236 = vmatpush.msra.mxu0 %v221
    %237 = vmatpush.msra.mxu0 %v220
    %238 = vmatpush.msra.mxu0 %v219
    %239 = vmatpush.msra.mxu0 %v218
    %240 = vmatpush.msra.mxu0 %v217
    %241 = vmatpush.msra.mxu0 %v216
    %242 = vmatpush.msra.mxu0 %v215
    %243 = vmatpush.msra.mxu0 %v214
    %244 = vmatpush.msra.mxu0 %v213
    %245 = vmatmul.f32.gmra.mxu0 %v211
    %v246 = vpop.f32.mrf.mxu0
    %v247 = vadd.f32 0.0, %v246
    %248 = vmatmul.f32.gmra.mxu0 %v212
    %v249 = vpop.f32.mrf.mxu0
    %v250 = vadd.f32 0.0, %v249
    %251 = vdwg.mxu0
    %v252 = vadd.f32 %v78, %v247
    %v253 = vadd.f32 %v79, %v250
    %254 = vst [vmem:[#allocation8] sm:$0xff] %v252
    %255 = vst [vmem:[#allocation8 + $0x8] sm:$0xff] %v253
    // Predicated region
    $region38: #{tpu_custom_call.1} parent=1 // pred_check
      _
    $region39: #{tpu_custom_call.1} parent=1 // pred_check_branch
      %257 = sbr.rel (0) target = $region41
    $region40: #{tpu_custom_call.1} parent=1 // pred_region
      %259 = vsyncadd [#allocation4], 0
      %s260 = sshll.u32 [#allocation8], 4
      %s261 = int_to_ptr.vmem [resolvable:$true] %s260
      %s262 = sshll.u32 %s5, 4
      %s263 = int_to_ptr.hbm [resolvable:$true] %s262
      %268 = dma.vmem_to_hbm [thread:$0]  %s261, 256, %s263, [#allocation4], 128, 128, 8
    $region41: #{tpu_custom_call.1} parent=1 // pred_fallthru
      _
    // Predicated region
    $region42: #{tpu_custom_call.1} parent=1 // pred_check
      _
    $region43: #{tpu_custom_call.1} parent=1 // pred_check_branch
      %270 = sbr.rel (0) target = $region45
    $region44: #{tpu_custom_call.1} parent=1 // pred_region
      %272 = dma.done [#allocation4], 256
    $region45: #{tpu_custom_call.1} parent=1 // pred_fallthru
      _
    %273 = vsyncpa [#allocation3], 1
    %274 = vsyncpa [#allocation6], 1
    %275 = vsyncpa [#allocation4], 1

</llo_original>
